<compile_context>
chip_gen: v6e
topology: v6e:2x2x1
jax: 0.10.0
libtpu: 0.0.40
codegen_flags: <defaults>
</compile_context>

<pallas_src>
import functools
import math

import jax
import jax.numpy as jnp
from jax.experimental import pallas as pl
from jax.experimental.pallas import tpu as pltpu


# ----------------------------- in-kernel helpers -----------------------------

def _bn_train(x, gamma, beta, inv_n, eps=1e-5):
    # Training-mode BatchNorm1d on a (B, tn) tile: per-column batch mean and
    # biased batch variance in one sweep (sum + sum-of-squares).
    s = jnp.sum(x, axis=0, keepdims=True)
    ss = jnp.sum(x * x, axis=0, keepdims=True)
    mean = s * inv_n
    var = ss * inv_n - mean * mean
    return (x - mean) * (jax.lax.rsqrt(var + eps) * gamma) + beta


def _modrelu(r, i, b):
    # scale = relu(mag + b) / mag with mag = sqrt(r^2 + i^2 + 1e-9)
    #       = max(1 + b * rsqrt(mag2), 0)   (mag2 >= 1e-9 > 0)
    # -> a single EUP rsqrt, no sqrt / divide chain.
    mag2 = r * r + i * i + 1e-9
    scale = jnp.maximum(1.0 + b * jax.lax.rsqrt(mag2), 0.0)
    return scale * r, scale * i


# ----------------------------- Pallas kernel ---------------------------------

def residual_block_kernel(xr_ref, xi_ref, w1r_ref, w1i_ref, w2r_ref, w2i_ref,
                          p1_ref, p2_ref, outr_ref, outi_ref,
                          accr_ref, acci_ref, *, mm_dtype, inv_n):
    # Grid axis k tiles layer-1 output features == layer-2 contraction (K) dim.
    # xr/xi: (B, Fp) f32, resident.  w1*: (Fp, tn) tiles.  w2*: (tn, Fp) tiles.
    # p1: (8, tn) per-tile layer-1 params [g1r, g1i, be1r, be1i, ab1, pad...].
    # p2: (8, Fp) resident layer-2 params [g2r, g2i, be2r, be2i, ab2, pad...].
    k = pl.program_id(0)

    @pl.when(k == 0)
    def _():
        accr_ref[...] = jnp.zeros_like(accr_ref)
        acci_ref[...] = jnp.zeros_like(acci_ref)

    xr = xr_ref[...]
    xi = xi_ref[...]
    xr_m = xr.astype(mm_dtype)
    xi_m = xi.astype(mm_dtype)

    # ---- layer 1, feature tile k: complex linear (biases dropped: cancelled
    # exactly by the following training-mode BatchNorm) -> BN -> modReLU ------
    w1r = w1r_ref[...]
    w1i = w1i_ref[...]
    hr = (jnp.dot(xr_m, w1r, preferred_element_type=jnp.float32)
          - jnp.dot(xi_m, w1i, preferred_element_type=jnp.float32))
    hi = (jnp.dot(xr_m, w1i, preferred_element_type=jnp.float32)
          + jnp.dot(xi_m, w1r, preferred_element_type=jnp.float32))
    hr = _bn_train(hr, p1_ref[0:1, :], p1_ref[2:3, :], inv_n)
    hi = _bn_train(hi, p1_ref[1:2, :], p1_ref[3:4, :], inv_n)
    hr, hi = _modrelu(hr, hi, p1_ref[4:5, :])

    # ---- layer 2: accumulate this K tile's partial products -----------------
    hr_m = hr.astype(mm_dtype)
    hi_m = hi.astype(mm_dtype)
    w2r = w2r_ref[...]
    w2i = w2i_ref[...]
    accr_ref[...] += (jnp.dot(hr_m, w2r, preferred_element_type=jnp.float32)
                      - jnp.dot(hi_m, w2i, preferred_element_type=jnp.float32))
    acci_ref[...] += (jnp.dot(hr_m, w2i, preferred_element_type=jnp.float32)
                      + jnp.dot(hi_m, w2r, preferred_element_type=jnp.float32))

    # ---- finalize: BN -> residual add -> modReLU -> store --------------------
    @pl.when(k == pl.num_programs(0) - 1)
    def _():
        h2r = _bn_train(accr_ref[...], p2_ref[0:1, :], p2_ref[2:3, :], inv_n) + xr
        h2i = _bn_train(acci_ref[...], p2_ref[1:2, :], p2_ref[3:4, :], inv_n) + xi
        r2, i2 = _modrelu(h2r, h2i, p2_ref[4:5, :])
        outr_ref[...] = r2
        outi_ref[...] = i2


# ----------------------------- parameter packing (hoisted, run once) ---------

def _round_up(n, m):
    return ((n + m - 1) // m) * m


def prepare_params(params, num_features, matmul_dtype=jnp.bfloat16):
    """Pad / transpose / cast all parameters once (not per call)."""
    F = num_features
    Fp = _round_up(F, 128)
    pad = Fp - F

    def pad_w_t(w):  # (F, F) -> W.T padded to (Fp, Fp), cast for the MXU
        return jnp.pad(w.astype(jnp.float32).T, ((0, pad), (0, pad))).astype(matmul_dtype)

    def pad_v(v):
        return jnp.pad(v.astype(jnp.float32), (0, pad))

    zeros = jnp.zeros((Fp,), jnp.float32)
    # Linear biases are intentionally dropped: a per-column constant added before
    # training-mode BatchNorm is exactly removed by the batch-mean subtraction.
    p1 = jnp.stack([pad_v(params["g1r"]), pad_v(params["g1i"]),
                    pad_v(params["be1r"]), pad_v(params["be1i"]),
                    pad_v(params["ab1"]), zeros, zeros, zeros], axis=0)   # (8, Fp)
    p2 = jnp.stack([pad_v(params["g2r"]), pad_v(params["g2i"]),
                    pad_v(params["be2r"]), pad_v(params["be2i"]),
                    pad_v(params["ab2"]), zeros, zeros, zeros], axis=0)   # (8, Fp)

    return {
        "w1r": pad_w_t(params["wr1"]), "w1i": pad_w_t(params["wi1"]),
        "w2r": pad_w_t(params["wr2"]), "w2i": pad_w_t(params["wi2"]),
        "p1": p1, "p2": p2, "F": F, "Fp": Fp,
    }


# ----------------------------- wrapper ---------------------------------------

def _vmem_limit_bytes(resident_bytes):
    # Cap at ~0.85x the *physical* VMEM of the actual chip (v5e/v6e: 128 MiB,
    # v7x: 64 MiB), with a conservative fallback if the query is unavailable.
    try:
        phys = int(getattr(pltpu.get_tpu_info(), "vmem_capacity_bytes", 0)) or 64 * 2**20
    except Exception:  # pragma: no cover - defensive
        phys = 64 * 2**20
    cap = int(0.85 * phys)
    return int(min(cap, max(8 * 2**20, 2 * resident_bytes)))


@functools.partial(jax.jit, static_argnames=("F", "Fp", "tn"))
def _residual_block_call(xr, xi, w1r, w1i, w2r, w2i, p1, p2, *, F, Fp, tn):
    B = xr.shape[0]
    pad = Fp - F
    # Only the feature dim is padded; padding the batch would change the
    # training-mode BatchNorm statistics.
    xr_p = jnp.pad(xr.astype(jnp.float32), ((0, 0), (0, pad)))
    xi_p = jnp.pad(xi.astype(jnp.float32), ((0, 0), (0, pad)))

    n_k = Fp // tn
    w_itemsize = jnp.dtype(w1r.dtype).itemsize
    resident = (6 * B * Fp * 4                     # x, out, acc (real + imag)
                + 4 * 2 * Fp * tn * w_itemsize     # 4 weight tiles, double-buffered
                + 8 * Fp * 4 + 2 * 8 * tn * 4)     # p2 resident + p1 tiles
    vmem_limit = _vmem_limit_bytes(resident)

    kernel = functools.partial(residual_block_kernel,
                               mm_dtype=w1r.dtype, inv_n=1.0 / B)

    grid_spec = pltpu.PrefetchScalarGridSpec(
        num_scalar_prefetch=0,
        grid=(n_k,),
        in_specs=[
            pl.BlockSpec((B, Fp), lambda k: (0, 0)),    # xr (resident)
            pl.BlockSpec((B, Fp), lambda k: (0, 0)),    # xi (resident)
            pl.BlockSpec((Fp, tn), lambda k: (0, k)),   # W1r.T tile (streamed)
            pl.BlockSpec((Fp, tn), lambda k: (0, k)),   # W1i.T tile (streamed)
            pl.BlockSpec((tn, Fp), lambda k: (k, 0)),   # W2r.T tile (streamed)
            pl.BlockSpec((tn, Fp), lambda k: (k, 0)),   # W2i.T tile (streamed)
            pl.BlockSpec((8, tn), lambda k: (0, k)),    # layer-1 per-feature params
            pl.BlockSpec((8, Fp), lambda k: (0, 0)),    # layer-2 params (resident)
        ],
        out_specs=[
            pl.BlockSpec((B, Fp), lambda k: (0, 0)),
            pl.BlockSpec((B, Fp), lambda k: (0, 0)),
        ],
        scratch_shapes=[pltpu.VMEM((B, Fp), jnp.float32),
                        pltpu.VMEM((B, Fp), jnp.float32)],
    )

    out_r, out_i = pl.pallas_call(
        kernel,
        out_shape=(jax.ShapeDtypeStruct((B, Fp), jnp.float32),
                   jax.ShapeDtypeStruct((B, Fp), jnp.float32)),
        grid_spec=grid_spec,
        compiler_params=pltpu.CompilerParams(
            dimension_semantics=("arbitrary",),   # K reduction for layer 2
            vmem_limit_bytes=vmem_limit),
        cost_estimate=pl.CostEstimate(
            flops=16 * B * Fp * Fp,                       # 8 matmuls (B,Fp)x(Fp,Fp)
            transcendentals=5 * B * Fp,                   # rsqrt in BN + modReLU
            bytes_accessed=4 * Fp * Fp * w_itemsize + 6 * B * Fp * 4),
    )(xr_p, xi_p, w1r, w1i, w2r, w2i, p1, p2)

    return out_r[:, :F], out_i[:, :F]


def residual_block_pallas(xr, xi, prepared):
    Fp = prepared["Fp"]
    tn = 512 if Fp % 512 == 0 else (256 if Fp % 256 == 0 else 128)
    return _residual_block_call(
        xr, xi, prepared["w1r"], prepared["w1i"], prepared["w2r"], prepared["w2i"],
        prepared["p1"], prepared["p2"], F=prepared["F"], Fp=Fp, tn=tn)


# ----------------------------- reference (pure JAX, f32) ----------------------

def residual_block_ref(xr, xi, p):
    def lin(ar, ai, wr, wi, br, bi):
        r = ar @ wr.T - ai @ wi.T + br
        i = ar @ wi.T + ai @ wr.T + bi
        return r, i

    def bn(x, g, b, eps=1e-5):
        m = x.mean(0, keepdims=True)
        v = ((x - m) ** 2).mean(0, keepdims=True)
        return (x - m) / jnp.sqrt(v + eps) * g + b

    def act(r, i, b):
        mag = jnp.sqrt(r * r + i * i + 1e-9)
        thr = jnp.maximum(mag + b[None, :], 0.0)
        s = thr / mag
        return s * r, s * i

    r, i = lin(xr, xi, p["wr1"], p["wi1"], p["br1"], p["bi1"])
    r, i = bn(r, p["g1r"], p["be1r"]), bn(i, p["g1i"], p["be1i"])
    r, i = act(r, i, p["ab1"])
    r2, i2 = lin(r, i, p["wr2"], p["wi2"], p["br2"], p["bi2"])
    r2, i2 = bn(r2, p["g2r"], p["be2r"]), bn(i2, p["g2i"], p["be2i"])
    r2, i2 = r2 + xr, i2 + xi
    return act(r2, i2, p["ab2"])


# ----------------------------- parameter init ---------------------------------

def init_params(key, F):
    bound = math.sqrt(6.0 / (F + F))  # xavier_uniform, gain=1
    ks = jax.random.split(key, 4)
    zeros = jnp.zeros((F,), jnp.float32)
    ones = jnp.ones((F,), jnp.float32)
    return {
        "wr1": jax.random.uniform(ks[0], (F, F), jnp.float32, -bound, bound),
        "wi1": jax.random.uniform(ks[1], (F, F), jnp.float32, -bound, bound),
        "br1": zeros, "bi1": zeros,
        "g1r": ones, "be1r": zeros, "g1i": ones, "be1i": zeros,
        "ab1": zeros,
        "wr2": jax.random.uniform(ks[2], (F, F), jnp.float32, -bound, bound),
        "wi2": jax.random.uniform(ks[3], (F, F), jnp.float32, -bound, bound),
        "br2": zeros, "bi2": zeros,
        "g2r": ones, "be2r": zeros, "g2i": ones, "be2i": zeros,
        "ab2": zeros,
    }


if __name__ == "__main__":
    B, F = 8, 32
    key = jax.random.PRNGKey(0)
    k_x, k_p = jax.random.split(key)
    kr, ki = jax.random.split(k_x)
    xr = jax.random.normal(kr, (B, F), jnp.float32)
    xi = jax.random.normal(ki, (B, F), jnp.float32)
    params = init_params(k_p, F)

    ref_r, ref_i = residual_block_ref(xr, xi, params)

    # 1) exact-semantics check: f32 MXU operands, tight tolerance
    prep_f32 = prepare_params(params, F, matmul_dtype=jnp.float32)
    out_r, out_i = residual_block_pallas(xr, xi, prep_f32)
    jax.block_until_ready((out_r, out_i))
    assert jnp.allclose(out_r, ref_r, atol=1e-4, rtol=1e-4), "real mismatch (f32)"
    assert jnp.allclose(out_i, ref_i, atol=1e-4, rtol=1e-4), "imag mismatch (f32)"

    # 2) performance path: bf16 MXU operands (f32 accumulation / elementwise)
    prep_bf16 = prepare_params(params, F, matmul_dtype=jnp.bfloat16)
    out_r, out_i = residual_block_pallas(xr, xi, prep_bf16)
    jax.block_until_ready((out_r, out_i))
    assert jnp.allclose(out_r, ref_r, atol=5e-2, rtol=5e-2), "real mismatch (bf16)"
    assert jnp.allclose(out_i, ref_i, atol=5e-2, rtol=5e-2), "imag mismatch (bf16)"

    print("KERNEL_OK")
</pallas_src>

<mosaic_0001>
module attributes {stable_mosaic.version = 11 : i64} {
  func.func @residual_block_kernel(%arg0: i32, %arg1: memref<8x128xf32, #tpu.memory_space<vmem>>, %arg2: memref<8x128xf32, #tpu.memory_space<vmem>>, %arg3: memref<128x128xf32, #tpu.memory_space<vmem>>, %arg4: memref<128x128xf32, #tpu.memory_space<vmem>>, %arg5: memref<128x128xf32, #tpu.memory_space<vmem>>, %arg6: memref<128x128xf32, #tpu.memory_space<vmem>>, %arg7: memref<8x128xf32, #tpu.memory_space<vmem>>, %arg8: memref<8x128xf32, #tpu.memory_space<vmem>>, %arg9: memref<8x128xf32, #tpu.memory_space<vmem>>, %arg10: memref<8x128xf32, #tpu.memory_space<vmem>>, %arg11: memref<8x128xf32, #tpu.memory_space<vmem>>, %arg12: memref<8x128xf32, #tpu.memory_space<vmem>>) attributes {dimension_semantics = [#tpu.dimension_semantics<arbitrary>], iteration_bounds = array<i64: 1>, scalar_prefetch = 0 : i64, scratch_operands = 2 : i64, tpu.core_type = #tpu.core_type<tc>, window_params = [{pipeline_mode = #tpu.pipeline_mode<synchronous>, transform_indices = @transform_0, window_bounds = array<i64: 8, 128>}, {pipeline_mode = #tpu.pipeline_mode<synchronous>, transform_indices = @transform_1, window_bounds = array<i64: 8, 128>}, {transform_indices = @transform_2, window_bounds = array<i64: 128, 128>}, {transform_indices = @transform_3, window_bounds = array<i64: 128, 128>}, {transform_indices = @transform_4, window_bounds = array<i64: 128, 128>}, {transform_indices = @transform_5, window_bounds = array<i64: 128, 128>}, {transform_indices = @transform_6, window_bounds = array<i64: 8, 128>}, {pipeline_mode = #tpu.pipeline_mode<synchronous>, transform_indices = @transform_7, window_bounds = array<i64: 8, 128>}, {pipeline_mode = #tpu.pipeline_mode<synchronous>, transform_indices = @transform_8, window_bounds = array<i64: 8, 128>}, {pipeline_mode = #tpu.pipeline_mode<synchronous>, transform_indices = @transform_9, window_bounds = array<i64: 8, 128>}]} {
    %c0_i32 = arith.constant 0 : i32
    %0 = arith.cmpi eq, %arg0, %c0_i32 : i32
    %1 = arith.extui %0 : i1 to i32
    %c0_i32_0 = arith.constant 0 : i32
    %2 = arith.cmpi ne, %1, %c0_i32_0 : i32
    scf.if %2 {
      %cst_48 = arith.constant 0.000000e+00 : f32
      %91 = vector.broadcast %cst_48 : f32 to vector<8x128xf32>
      %c0_49 = arith.constant 0 : index
      %c0_50 = arith.constant 0 : index
      %92 = vector.load %arg11[%c0_49, %c0_50] : memref<8x128xf32, #tpu.memory_space<vmem>>, vector<8x128xf32>
      tpu.vector_store %arg11[%c0_49, %c0_50], %91 {strides = array<i32>} : memref<8x128xf32, #tpu.memory_space<vmem>>, vector<8x128xf32>,
      %cst_51 = arith.constant 0.000000e+00 : f32
      %93 = vector.broadcast %cst_51 : f32 to vector<8x128xf32>
      %c0_52 = arith.constant 0 : index
      %c0_53 = arith.constant 0 : index
      %94 = vector.load %arg12[%c0_52, %c0_53] : memref<8x128xf32, #tpu.memory_space<vmem>>, vector<8x128xf32>
      tpu.vector_store %arg12[%c0_52, %c0_53], %93 {strides = array<i32>} : memref<8x128xf32, #tpu.memory_space<vmem>>, vector<8x128xf32>,
    } else {
    }
    %c0 = arith.constant 0 : index
    %c0_1 = arith.constant 0 : index
    %3 = vector.load %arg1[%c0, %c0_1] : memref<8x128xf32, #tpu.memory_space<vmem>>, vector<8x128xf32>
    %c0_2 = arith.constant 0 : index
    %c0_3 = arith.constant 0 : index
    %4 = vector.load %arg2[%c0_2, %c0_3] : memref<8x128xf32, #tpu.memory_space<vmem>>, vector<8x128xf32>
    %c0_4 = arith.constant 0 : index
    %c0_5 = arith.constant 0 : index
    %5 = vector.load %arg3[%c0_4, %c0_5] : memref<128x128xf32, #tpu.memory_space<vmem>>, vector<128x128xf32>
    %c0_6 = arith.constant 0 : index
    %c0_7 = arith.constant 0 : index
    %6 = vector.load %arg4[%c0_6, %c0_7] : memref<128x128xf32, #tpu.memory_space<vmem>>, vector<128x128xf32>
    %cst = arith.constant dense<0.000000e+00> : vector<8x128xf32>
    %7 = tpu.matmul %3, %5, %cst {dimension_numbers = #tpu.dot_dimension_numbers<[1], [0], [0], [1], [0, 0, 1, 1], [], []>} : vector<8x128xf32>, vector<128x128xf32>, vector<8x128xf32> -> vector<8x128xf32>
    %cst_8 = arith.constant dense<0.000000e+00> : vector<8x128xf32>
    %8 = tpu.matmul %4, %6, %cst_8 {dimension_numbers = #tpu.dot_dimension_numbers<[1], [0], [0], [1], [0, 0, 1, 1], [], []>} : vector<8x128xf32>, vector<128x128xf32>, vector<8x128xf32> -> vector<8x128xf32>
    %9 = arith.subf %7, %8 : vector<8x128xf32>
    %cst_9 = arith.constant dense<0.000000e+00> : vector<8x128xf32>
    %10 = tpu.matmul %3, %6, %cst_9 {dimension_numbers = #tpu.dot_dimension_numbers<[1], [0], [0], [1], [0, 0, 1, 1], [], []>} : vector<8x128xf32>, vector<128x128xf32>, vector<8x128xf32> -> vector<8x128xf32>
    %cst_10 = arith.constant dense<0.000000e+00> : vector<8x128xf32>
    %11 = tpu.matmul %4, %5, %cst_10 {dimension_numbers = #tpu.dot_dimension_numbers<[1], [0], [0], [1], [0, 0, 1, 1], [], []>} : vector<8x128xf32>, vector<128x128xf32>, vector<8x128xf32> -> vector<8x128xf32>
    %12 = arith.addf %10, %11 : vector<8x128xf32>
    %c0_11 = arith.constant 0 : index
    %c0_12 = arith.constant 0 : index
    %13 = vector.load %arg7[%c0_11, %c0_12] : memref<8x128xf32, #tpu.memory_space<vmem>>, vector<1x128xf32>
    %c2 = arith.constant 2 : index
    %c0_13 = arith.constant 0 : index
    %14 = vector.load %arg7[%c2, %c0_13] : memref<8x128xf32, #tpu.memory_space<vmem>>, vector<1x128xf32>
    %cst_14 = arith.constant dense<0.000000e+00> : vector<128xf32>
    %15 = vector.multi_reduction <add>, %9, %cst_14 [0] : vector<8x128xf32> to vector<128xf32>
    %16 = vector.shape_cast %15 : vector<128xf32> to vector<1x128xf32>
    %17 = arith.mulf %9, %9 : vector<8x128xf32>
    %cst_15 = arith.constant dense<0.000000e+00> : vector<128xf32>
    %18 = vector.multi_reduction <add>, %17, %cst_15 [0] : vector<8x128xf32> to vector<128xf32>
    %19 = vector.shape_cast %18 : vector<128xf32> to vector<1x128xf32>
    %cst_16 = arith.constant 1.250000e-01 : f32
    %20 = vector.broadcast %cst_16 : f32 to vector<1x128xf32>
    %21 = arith.mulf %16, %20 : vector<1x128xf32>
    %cst_17 = arith.constant 1.250000e-01 : f32
    %22 = vector.broadcast %cst_17 : f32 to vector<1x128xf32>
    %23 = arith.mulf %19, %22 : vector<1x128xf32>
    %24 = arith.mulf %21, %21 : vector<1x128xf32>
    %25 = arith.subf %23, %24 : vector<1x128xf32>
    %26 = vector.broadcast %21 : vector<1x128xf32> to vector<8x128xf32>
    %27 = arith.subf %9, %26 : vector<8x128xf32>
    %cst_18 = arith.constant 9.99999974E-6 : f32
    %28 = vector.broadcast %cst_18 : f32 to vector<1x128xf32>
    %29 = arith.addf %25, %28 : vector<1x128xf32>
    %30 = math.rsqrt %29 : vector<1x128xf32>
    %31 = arith.mulf %30, %13 : vector<1x128xf32>
    %32 = vector.broadcast %31 : vector<1x128xf32> to vector<8x128xf32>
    %33 = arith.mulf %27, %32 : vector<8x128xf32>
    %34 = vector.broadcast %14 : vector<1x128xf32> to vector<8x128xf32>
    %35 = arith.addf %33, %34 : vector<8x128xf32>
    %c1 = arith.constant 1 : index
    %c0_19 = arith.constant 0 : index
    %36 = vector.load %arg7[%c1, %c0_19] : memref<8x128xf32, #tpu.memory_space<vmem>>, vector<1x128xf32>
    %c3 = arith.constant 3 : index
    %c0_20 = arith.constant 0 : index
    %37 = vector.load %arg7[%c3, %c0_20] : memref<8x128xf32, #tpu.memory_space<vmem>>, vector<1x128xf32>
    %cst_21 = arith.constant dense<0.000000e+00> : vector<128xf32>
    %38 = vector.multi_reduction <add>, %12, %cst_21 [0] : vector<8x128xf32> to vector<128xf32>
    %39 = vector.shape_cast %38 : vector<128xf32> to vector<1x128xf32>
    %40 = arith.mulf %12, %12 : vector<8x128xf32>
    %cst_22 = arith.constant dense<0.000000e+00> : vector<128xf32>
    %41 = vector.multi_reduction <add>, %40, %cst_22 [0] : vector<8x128xf32> to vector<128xf32>
    %42 = vector.shape_cast %41 : vector<128xf32> to vector<1x128xf32>
    %cst_23 = arith.constant 1.250000e-01 : f32
    %43 = vector.broadcast %cst_23 : f32 to vector<1x128xf32>
    %44 = arith.mulf %39, %43 : vector<1x128xf32>
    %cst_24 = arith.constant 1.250000e-01 : f32
    %45 = vector.broadcast %cst_24 : f32 to vector<1x128xf32>
    %46 = arith.mulf %42, %45 : vector<1x128xf32>
    %47 = arith.mulf %44, %44 : vector<1x128xf32>
    %48 = arith.subf %46, %47 : vector<1x128xf32>
    %49 = vector.broadcast %44 : vector<1x128xf32> to vector<8x128xf32>
    %50 = arith.subf %12, %49 : vector<8x128xf32>
    %cst_25 = arith.constant 9.99999974E-6 : f32
    %51 = vector.broadcast %cst_25 : f32 to vector<1x128xf32>
    %52 = arith.addf %48, %51 : vector<1x128xf32>
    %53 = math.rsqrt %52 : vector<1x128xf32>
    %54 = arith.mulf %53, %36 : vector<1x128xf32>
    %55 = vector.broadcast %54 : vector<1x128xf32> to vector<8x128xf32>
    %56 = arith.mulf %50, %55 : vector<8x128xf32>
    %57 = vector.broadcast %37 : vector<1x128xf32> to vector<8x128xf32>
    %58 = arith.addf %56, %57 : vector<8x128xf32>
    %c4 = arith.constant 4 : index
    %c0_26 = arith.constant 0 : index
    %59 = vector.load %arg7[%c4, %c0_26] : memref<8x128xf32, #tpu.memory_space<vmem>>, vector<1x128xf32>
    %60 = arith.mulf %35, %35 : vector<8x128xf32>
    %61 = arith.mulf %58, %58 : vector<8x128xf32>
    %62 = arith.addf %60, %61 : vector<8x128xf32>
    %cst_27 = arith.constant 9.99999971E-10 : f32
    %63 = vector.broadcast %cst_27 : f32 to vector<8x128xf32>
    %64 = arith.addf %62, %63 : vector<8x128xf32>
    %65 = math.rsqrt %64 : vector<8x128xf32>
    %66 = vector.broadcast %59 : vector<1x128xf32> to vector<8x128xf32>
    %67 = arith.mulf %66, %65 : vector<8x128xf32>
    %cst_28 = arith.constant 1.000000e+00 : f32
    %68 = vector.broadcast %cst_28 : f32 to vector<8x128xf32>
    %69 = arith.addf %68, %67 : vector<8x128xf32>
    %cst_29 = arith.constant 0.000000e+00 : f32
    %70 = vector.broadcast %cst_29 : f32 to vector<8x128xf32>
    %71 = arith.maximumf %69, %70 : vector<8x128xf32>
    %72 = arith.mulf %71, %35 : vector<8x128xf32>
    %73 = arith.mulf %71, %58 : vector<8x128xf32>
    %c0_30 = arith.constant 0 : index
    %c0_31 = arith.constant 0 : index
    %74 = vector.load %arg5[%c0_30, %c0_31] : memref<128x128xf32, #tpu.memory_space<vmem>>, vector<128x128xf32>
    %c0_32 = arith.constant 0 : index
    %c0_33 = arith.constant 0 : index
    %75 = vector.load %arg6[%c0_32, %c0_33] : memref<128x128xf32, #tpu.memory_space<vmem>>, vector<128x128xf32>
    %c0_34 = arith.constant 0 : index
    %c0_35 = arith.constant 0 : index
    %76 = vector.load %arg11[%c0_34, %c0_35] : memref<8x128xf32, #tpu.memory_space<vmem>>, vector<8x128xf32>
    %cst_36 = arith.constant dense<0.000000e+00> : vector<8x128xf32>
    %77 = tpu.matmul %72, %74, %cst_36 {dimension_numbers = #tpu.dot_dimension_numbers<[1], [0], [0], [1], [0, 0, 1, 1], [], []>} : vector<8x128xf32>, vector<128x128xf32>, vector<8x128xf32> -> vector<8x128xf32>
    %cst_37 = arith.constant dense<0.000000e+00> : vector<8x128xf32>
    %78 = tpu.matmul %73, %75, %cst_37 {dimension_numbers = #tpu.dot_dimension_numbers<[1], [0], [0], [1], [0, 0, 1, 1], [], []>} : vector<8x128xf32>, vector<128x128xf32>, vector<8x128xf32> -> vector<8x128xf32>
    %79 = arith.subf %77, %78 : vector<8x128xf32>
    %80 = arith.addf %76, %79 : vector<8x128xf32>
    %c0_38 = arith.constant 0 : index
    %c0_39 = arith.constant 0 : index
    %81 = vector.load %arg11[%c0_38, %c0_39] : memref<8x128xf32, #tpu.memory_space<vmem>>, vector<8x128xf32>
    tpu.vector_store %arg11[%c0_38, %c0_39], %80 {strides = array<i32>} : memref<8x128xf32, #tpu.memory_space<vmem>>, vector<8x128xf32>,
    %c0_40 = arith.constant 0 : index
    %c0_41 = arith.constant 0 : index
    %82 = vector.load %arg12[%c0_40, %c0_41] : memref<8x128xf32, #tpu.memory_space<vmem>>, vector<8x128xf32>
    %cst_42 = arith.constant dense<0.000000e+00> : vector<8x128xf32>
    %83 = tpu.matmul %72, %75, %cst_42 {dimension_numbers = #tpu.dot_dimension_numbers<[1], [0], [0], [1], [0, 0, 1, 1], [], []>} : vector<8x128xf32>, vector<128x128xf32>, vector<8x128xf32> -> vector<8x128xf32>
    %cst_43 = arith.constant dense<0.000000e+00> : vector<8x128xf32>
    %84 = tpu.matmul %73, %74, %cst_43 {dimension_numbers = #tpu.dot_dimension_numbers<[1], [0], [0], [1], [0, 0, 1, 1], [], []>} : vector<8x128xf32>, vector<128x128xf32>, vector<8x128xf32> -> vector<8x128xf32>
    %85 = arith.addf %83, %84 : vector<8x128xf32>
    %86 = arith.addf %82, %85 : vector<8x128xf32>
    %c0_44 = arith.constant 0 : index
    %c0_45 = arith.constant 0 : index
    %87 = vector.load %arg12[%c0_44, %c0_45] : memref<8x128xf32, #tpu.memory_space<vmem>>, vector<8x128xf32>
    tpu.vector_store %arg12[%c0_44, %c0_45], %86 {strides = array<i32>} : memref<8x128xf32, #tpu.memory_space<vmem>>, vector<8x128xf32>,
    %c0_i32_46 = arith.constant 0 : i32
    %88 = arith.cmpi eq, %arg0, %c0_i32_46 : i32
    %89 = arith.extui %88 : i1 to i32
    %c0_i32_47 = arith.constant 0 : i32
    %90 = arith.cmpi ne, %89, %c0_i32_47 : i32
    scf.if %90 {
      %c0_48 = arith.constant 0 : index
      %c0_49 = arith.constant 0 : index
      %91 = vector.load %arg11[%c0_48, %c0_49] : memref<8x128xf32, #tpu.memory_space<vmem>>, vector<8x128xf32>
      %c0_50 = arith.constant 0 : index
      %c0_51 = arith.constant 0 : index
      %92 = vector.load %arg8[%c0_50, %c0_51] : memref<8x128xf32, #tpu.memory_space<vmem>>, vector<1x128xf32>
      %c2_52 = arith.constant 2 : index
      %c0_53 = arith.constant 0 : index
      %93 = vector.load %arg8[%c2_52, %c0_53] : memref<8x128xf32, #tpu.memory_space<vmem>>, vector<1x128xf32>
      %cst_54 = arith.constant dense<0.000000e+00> : vector<128xf32>
      %94 = vector.multi_reduction <add>, %91, %cst_54 [0] : vector<8x128xf32> to vector<128xf32>
      %95 = vector.shape_cast %94 : vector<128xf32> to vector<1x128xf32>
      %96 = arith.mulf %91, %91 : vector<8x128xf32>
      %cst_55 = arith.constant dense<0.000000e+00> : vector<128xf32>
      %97 = vector.multi_reduction <add>, %96, %cst_55 [0] : vector<8x128xf32> to vector<128xf32>
      %98 = vector.shape_cast %97 : vector<128xf32> to vector<1x128xf32>
      %cst_56 = arith.constant 1.250000e-01 : f32
      %99 = vector.broadcast %cst_56 : f32 to vector<1x128xf32>
      %100 = arith.mulf %95, %99 : vector<1x128xf32>
      %cst_57 = arith.constant 1.250000e-01 : f32
      %101 = vector.broadcast %cst_57 : f32 to vector<1x128xf32>
      %102 = arith.mulf %98, %101 : vector<1x128xf32>
      %103 = arith.mulf %100, %100 : vector<1x128xf32>
      %104 = arith.subf %102, %103 : vector<1x128xf32>
      %105 = vector.broadcast %100 : vector<1x128xf32> to vector<8x128xf32>
      %106 = arith.subf %91, %105 : vector<8x128xf32>
      %cst_58 = arith.constant 9.99999974E-6 : f32
      %107 = vector.broadcast %cst_58 : f32 to vector<1x128xf32>
      %108 = arith.addf %104, %107 : vector<1x128xf32>
      %109 = math.rsqrt %108 : vector<1x128xf32>
      %110 = arith.mulf %109, %92 : vector<1x128xf32>
      %111 = vector.broadcast %110 : vector<1x128xf32> to vector<8x128xf32>
      %112 = arith.mulf %106, %111 : vector<8x128xf32>
      %113 = vector.broadcast %93 : vector<1x128xf32> to vector<8x128xf32>
      %114 = arith.addf %112, %113 : vector<8x128xf32>
      %115 = arith.addf %114, %3 : vector<8x128xf32>
      %c0_59 = arith.constant 0 : index
      %c0_60 = arith.constant 0 : index
      %116 = vector.load %arg12[%c0_59, %c0_60] : memref<8x128xf32, #tpu.memory_space<vmem>>, vector<8x128xf32>
      %c1_61 = arith.constant 1 : index
      %c0_62 = arith.constant 0 : index
      %117 = vector.load %arg8[%c1_61, %c0_62] : memref<8x128xf32, #tpu.memory_space<vmem>>, vector<1x128xf32>
      %c3_63 = arith.constant 3 : index
      %c0_64 = arith.constant 0 : index
      %118 = vector.load %arg8[%c3_63, %c0_64] : memref<8x128xf32, #tpu.memory_space<vmem>>, vector<1x128xf32>
      %cst_65 = arith.constant dense<0.000000e+00> : vector<128xf32>
      %119 = vector.multi_reduction <add>, %116, %cst_65 [0] : vector<8x128xf32> to vector<128xf32>
      %120 = vector.shape_cast %119 : vector<128xf32> to vector<1x128xf32>
      %121 = arith.mulf %116, %116 : vector<8x128xf32>
      %cst_66 = arith.constant dense<0.000000e+00> : vector<128xf32>
      %122 = vector.multi_reduction <add>, %121, %cst_66 [0] : vector<8x128xf32> to vector<128xf32>
      %123 = vector.shape_cast %122 : vector<128xf32> to vector<1x128xf32>
      %cst_67 = arith.constant 1.250000e-01 : f32
      %124 = vector.broadcast %cst_67 : f32 to vector<1x128xf32>
      %125 = arith.mulf %120, %124 : vector<1x128xf32>
      %cst_68 = arith.constant 1.250000e-01 : f32
      %126 = vector.broadcast %cst_68 : f32 to vector<1x128xf32>
      %127 = arith.mulf %123, %126 : vector<1x128xf32>
      %128 = arith.mulf %125, %125 : vector<1x128xf32>
      %129 = arith.subf %127, %128 : vector<1x128xf32>
      %130 = vector.broadcast %125 : vector<1x128xf32> to vector<8x128xf32>
      %131 = arith.subf %116, %130 : vector<8x128xf32>
      %cst_69 = arith.constant 9.99999974E-6 : f32
      %132 = vector.broadcast %cst_69 : f32 to vector<1x128xf32>
      %133 = arith.addf %129, %132 : vector<1x128xf32>
      %134 = math.rsqrt %133 : vector<1x128xf32>
      %135 = arith.mulf %134, %117 : vector<1x128xf32>
      %136 = vector.broadcast %135 : vector<1x128xf32> to vector<8x128xf32>
      %137 = arith.mulf %131, %136 : vector<8x128xf32>
      %138 = vector.broadcast %118 : vector<1x128xf32> to vector<8x128xf32>
      %139 = arith.addf %137, %138 : vector<8x128xf32>
      %140 = arith.addf %139, %4 : vector<8x128xf32>
      %c4_70 = arith.constant 4 : index
      %c0_71 = arith.constant 0 : index
      %141 = vector.load %arg8[%c4_70, %c0_71] : memref<8x128xf32, #tpu.memory_space<vmem>>, vector<1x128xf32>
      %142 = arith.mulf %115, %115 : vector<8x128xf32>
      %143 = arith.mulf %140, %140 : vector<8x128xf32>
      %144 = arith.addf %142, %143 : vector<8x128xf32>
      %cst_72 = arith.constant 9.99999971E-10 : f32
      %145 = vector.broadcast %cst_72 : f32 to vector<8x128xf32>
      %146 = arith.addf %144, %145 : vector<8x128xf32>
      %147 = math.rsqrt %146 : vector<8x128xf32>
      %148 = vector.broadcast %141 : vector<1x128xf32> to vector<8x128xf32>
      %149 = arith.mulf %148, %147 : vector<8x128xf32>
      %cst_73 = arith.constant 1.000000e+00 : f32
      %150 = vector.broadcast %cst_73 : f32 to vector<8x128xf32>
      %151 = arith.addf %150, %149 : vector<8x128xf32>
      %cst_74 = arith.constant 0.000000e+00 : f32
      %152 = vector.broadcast %cst_74 : f32 to vector<8x128xf32>
      %153 = arith.maximumf %151, %152 : vector<8x128xf32>
      %154 = arith.mulf %153, %115 : vector<8x128xf32>
      %155 = arith.mulf %153, %140 : vector<8x128xf32>
      %c0_75 = arith.constant 0 : index
      %c0_76 = arith.constant 0 : index
      %156 = vector.load %arg9[%c0_75, %c0_76] : memref<8x128xf32, #tpu.memory_space<vmem>>, vector<8x128xf32>
      tpu.vector_store %arg9[%c0_75, %c0_76], %154 {strides = array<i32>} : memref<8x128xf32, #tpu.memory_space<vmem>>, vector<8x128xf32>,
      %c0_77 = arith.constant 0 : index
      %c0_78 = arith.constant 0 : index
      %157 = vector.load %arg10[%c0_77, %c0_78] : memref<8x128xf32, #tpu.memory_space<vmem>>, vector<8x128xf32>
      tpu.vector_store %arg10[%c0_77, %c0_78], %155 {strides = array<i32>} : memref<8x128xf32, #tpu.memory_space<vmem>>, vector<8x128xf32>,
    } else {
    }
    return
  }
  func.func @transform_0(%arg0: i32) -> (i32, i32) {
    %c0_i32 = arith.constant 0 : i32
    %c0_i32_0 = arith.constant 0 : i32
    %c0_i32_1 = arith.constant 0 : i32
    return %c0_i32, %c0_i32_0 : i32, i32
  }
  func.func @transform_1(%arg0: i32) -> (i32, i32) {
    %c0_i32 = arith.constant 0 : i32
    %c0_i32_0 = arith.constant 0 : i32
    %c0_i32_1 = arith.constant 0 : i32
    return %c0_i32, %c0_i32_0 : i32, i32
  }
  func.func @transform_2(%arg0: i32) -> (i32, i32) {
    %c0_i32 = arith.constant 0 : i32
    %c0_i32_0 = arith.constant 0 : i32
    return %c0_i32, %arg0 : i32, i32
  }
  func.func @transform_3(%arg0: i32) -> (i32, i32) {
    %c0_i32 = arith.constant 0 : i32
    %c0_i32_0 = arith.constant 0 : i32
    return %c0_i32, %arg0 : i32, i32
  }
  func.func @transform_4(%arg0: i32) -> (i32, i32) {
    %c0_i32 = arith.constant 0 : i32
    %c0_i32_0 = arith.constant 0 : i32
    return %arg0, %c0_i32 : i32, i32
  }
  func.func @transform_5(%arg0: i32) -> (i32, i32) {
    %c0_i32 = arith.constant 0 : i32
    %c0_i32_0 = arith.constant 0 : i32
    return %arg0, %c0_i32 : i32, i32
  }
  func.func @transform_6(%arg0: i32) -> (i32, i32) {
    %c0_i32 = arith.constant 0 : i32
    %c0_i32_0 = arith.constant 0 : i32
    return %c0_i32, %arg0 : i32, i32
  }
  func.func @transform_7(%arg0: i32) -> (i32, i32) {
    %c0_i32 = arith.constant 0 : i32
    %c0_i32_0 = arith.constant 0 : i32
    %c0_i32_1 = arith.constant 0 : i32
    return %c0_i32, %c0_i32_0 : i32, i32
  }
  func.func @transform_8(%arg0: i32) -> (i32, i32) {
    %c0_i32 = arith.constant 0 : i32
    %c0_i32_0 = arith.constant 0 : i32
    %c0_i32_1 = arith.constant 0 : i32
    return %c0_i32, %c0_i32_0 : i32, i32
  }
  func.func @transform_9(%arg0: i32) -> (i32, i32) {
    %c0_i32 = arith.constant 0 : i32
    %c0_i32_0 = arith.constant 0 : i32
    %c0_i32_1 = arith.constant 0 : i32
    return %c0_i32, %c0_i32_0 : i32, i32
  }
}

</mosaic_0001>

<llo_original>
// kernel: _residual_block_call.1
$region0: #{_residual_block_call.1}
  #allocation0 [shape = 'u32[]', space=smem, size = 0x4, offset = 0x4, fixed_abs, tag = 'smem constant byte address 0x4 - core index']
  #allocation1 [shape = 'u32[144,128]{1,0:T(1,128)}', space=vmem, size = 0x12000, scoped, tag = 'internal scratch']
  #allocation2 [shape = 'f32[8,128]{1,0:T(8,128)}', space=vmem, size = 0x1000, scoped, tag = 'scratch operand']
  #allocation3 [shape = 'f32[8,128]{1,0:T(8,128)}', space=vmem, size = 0x1000, scoped, tag = 'scratch operand']
  %s0 = inlined_call_operand.vmem [shape: f32[8,128], index: 0, kind: input, shape index: {}]
  %s1 = inlined_call_operand.vmem [shape: f32[8,128], index: 1, kind: input, shape index: {}]
  %s2 = inlined_call_operand.hbm [shape: f32[128,128], index: 2, kind: input, shape index: {}]
  %s3 = inlined_call_operand.hbm [shape: f32[128,128], index: 3, kind: input, shape index: {}]
  %s4 = inlined_call_operand.hbm [shape: f32[128,128], index: 4, kind: input, shape index: {}]
  %s5 = inlined_call_operand.hbm [shape: f32[128,128], index: 5, kind: input, shape index: {}]
  %s6 = inlined_call_operand.vmem [shape: f32[8,128], index: 6, kind: input, shape index: {}]
  %s7 = inlined_call_operand.vmem [shape: f32[8,128], index: 7, kind: input, shape index: {}]
  %s8 = inlined_call_operand.hbm [shape: f32[8,128], index: 8, kind: output, shape index: {0}]
  %s9 = inlined_call_operand.hbm [shape: f32[8,128], index: 9, kind: output, shape index: {1}]
  %10 = xla_tuple %s8, %s9
  %s11 = sld [smem:[#allocation0]]
  $region74: #{_residual_block_call.1} parent=0
    _
  %s13 = ssub.s32 1, %s11
  %s14 = scalar_select 0, %s13, %s11
  $region1: #{_residual_block_call.1} parent=0
    #allocation4 [shape = 'u8[65536]{0}', space=vmem, size = 0x10000, scoped, tag = 'input window, operand 2, single buffered']
    #allocation5 [shape = 's32[1]{0}', space=sflag, size = 0x4, scoped, tag = 'scoped memory for _residual_block_call.1']
    #allocation6 [shape = 's32[1]{0}', space=sflag, size = 0x4, scoped, tag = 'scoped memory for _residual_block_call.1']
    #allocation7 [shape = 'u8[65536]{0}', space=vmem, size = 0x10000, scoped, tag = 'input window, operand 3, single buffered']
    #allocation8 [shape = 's32[1]{0}', space=sflag, size = 0x4, scoped, tag = 'scoped memory for _residual_block_call.1']
    #allocation9 [shape = 'u8[65536]{0}', space=vmem, size = 0x10000, scoped, tag = 'input window, operand 4, single buffered']
    #allocation10 [shape = 'u8[65536]{0}', space=vmem, size = 0x10000, scoped, tag = 'input window, operand 5, single buffered']
    #allocation11 [shape = 's32[1]{0}', space=sflag, size = 0x4, scoped, tag = 'scoped memory for _residual_block_call.1']
    #allocation12 [shape = 'u8[4096]{0}', space=vmem, size = 0x1000, scoped, tag = 'output window, operand 0, single buffered']
    #allocation13 [shape = 'u8[4096]{0}', space=vmem, size = 0x1000, scoped, tag = 'output window, operand 1, single buffered']
    #allocation14 [shape = 's32[1]{0}', space=sflag, size = 0x4, scoped, tag = 'scoped memory for _residual_block_call.1']
    %15 = vsyncpa [#allocation5], 0
    %16 = vsyncpa [#allocation8], 0
    %17 = vsyncpa [#allocation11], 0
    %18 = vsyncpa [#allocation6], 0
    %19 = vsyncpa [#allocation14], 0
    // Predicated region
    $region2: #{_residual_block_call.1} parent=1 // pred_check
      _
    $region3: #{_residual_block_call.1} parent=1 // pred_check_branch
      %21 = sbr.rel (0) target = $region5
    $region4: #{_residual_block_call.1} parent=1 // pred_region
      _
    $region5: #{_residual_block_call.1} parent=1 // pred_fallthru
      _
    // Predicated region
    $region6: #{_residual_block_call.1} parent=1 // pred_check
      _
    $region7: #{_residual_block_call.1} parent=1 // pred_check_branch
      %23 = sbr.rel (0) target = $region9
    $region8: #{_residual_block_call.1} parent=1 // pred_region
      _
    $region9: #{_residual_block_call.1} parent=1 // pred_fallthru
      _
    // Predicated region
    $region10: #{_residual_block_call.1} parent=1 // pred_check
      _
    $region11: #{_residual_block_call.1} parent=1 // pred_check_branch
      %25 = sbr.rel (0) target = $region13
    $region12: #{_residual_block_call.1} parent=1 // pred_region
      %s27 = ssub.s32 2048, 2048
      %28 = vsyncadd [#allocation5], %s27
      %s29 = sshll.u32 [#allocation4], 4
      %s30 = int_to_ptr.vmem [resolvable:$true] %s29
      %35 = dma.hbm_to_vmem [thread:$0]  %s2, 2048, %s30, [#allocation5], 128, 128, 8
    $region13: #{_residual_block_call.1} parent=1 // pred_fallthru
      _
    // Predicated region
    $region14: #{_residual_block_call.1} parent=1 // pred_check
      _
    $region15: #{_residual_block_call.1} parent=1 // pred_check_branch
      %37 = sbr.rel (0) target = $region17
    $region16: #{_residual_block_call.1} parent=1 // pred_region
      %s39 = ssub.s32 2048, 2048
      %40 = vsyncadd [#allocation8], %s39
      %s41 = sshll.u32 [#allocation7], 4
      %s42 = int_to_ptr.vmem [resolvable:$true] %s41
      %47 = dma.hbm_to_vmem [thread:$0]  %s3, 2048, %s42, [#allocation8], 128, 128, 8
    $region17: #{_residual_block_call.1} parent=1 // pred_fallthru
      _
    // Predicated region
    $region18: #{_residual_block_call.1} parent=1 // pred_check
      _
    $region19: #{_residual_block_call.1} parent=1 // pred_check_branch
      %49 = sbr.rel (0) target = $region21
    $region20: #{_residual_block_call.1} parent=1 // pred_region
      %s51 = ssub.s32 2048, 2048
      %52 = vsyncadd [#allocation8], %s51
      %s53 = sshll.u32 [#allocation9], 4
      %s54 = int_to_ptr.vmem [resolvable:$true] %s53
      %59 = dma.hbm_to_vmem [thread:$0]  %s4, 2048, %s54, [#allocation8], 128, 128, 8
    $region21: #{_residual_block_call.1} parent=1 // pred_fallthru
      _
    // Predicated region
    $region22: #{_residual_block_call.1} parent=1 // pred_check
      _
    $region23: #{_residual_block_call.1} parent=1 // pred_check_branch
      %61 = sbr.rel (0) target = $region25
    $region24: #{_residual_block_call.1} parent=1 // pred_region
      %s63 = ssub.s32 2048, 2048
      %64 = vsyncadd [#allocation11], %s63
      %s65 = sshll.u32 [#allocation10], 4
      %s66 = int_to_ptr.vmem [resolvable:$true] %s65
      %71 = dma.hbm_to_vmem [thread:$0]  %s5, 2048, %s66, [#allocation11], 128, 128, 8
    $region25: #{_residual_block_call.1} parent=1 // pred_fallthru
      _
    // Predicated region
    $region26: #{_residual_block_call.1} parent=1 // pred_check
      _
    $region27: #{_residual_block_call.1} parent=1 // pred_check_branch
      %73 = sbr.rel (0) target = $region29
    $region28: #{_residual_block_call.1} parent=1 // pred_region
      _
    $region29: #{_residual_block_call.1} parent=1 // pred_fallthru
      _
    // Predicated region
    $region30: #{_residual_block_call.1} parent=1 // pred_check
      _
    $region31: #{_residual_block_call.1} parent=1 // pred_check_branch
      %75 = sbr.rel (0) target = $region33
    $region32: #{_residual_block_call.1} parent=1 // pred_region
      _
    $region33: #{_residual_block_call.1} parent=1 // pred_fallthru
      _
    // Predicated region
    $region34: #{_residual_block_call.1} parent=1 // pred_check
      _
    $region35: #{_residual_block_call.1} parent=1 // pred_check_branch
      %77 = sbr.rel (0) target = $region37
    $region36: #{_residual_block_call.1} parent=1 // pred_region
      %78 = dma.done [#allocation5], 2048
    $region37: #{_residual_block_call.1} parent=1 // pred_fallthru
      _
    // Predicated region
    $region38: #{_residual_block_call.1} parent=1 // pred_check
      _
    $region39: #{_residual_block_call.1} parent=1 // pred_check_branch
      %80 = sbr.rel (0) target = $region41
    $region40: #{_residual_block_call.1} parent=1 // pred_region
      %81 = dma.done [#allocation8], 2048
    $region41: #{_residual_block_call.1} parent=1 // pred_fallthru
      _
    // Predicated region
    $region42: #{_residual_block_call.1} parent=1 // pred_check
      _
    $region43: #{_residual_block_call.1} parent=1 // pred_check_branch
      %83 = sbr.rel (0) target = $region45
    $region44: #{_residual_block_call.1} parent=1 // pred_region
      %84 = dma.done [#allocation8], 2048
    $region45: #{_residual_block_call.1} parent=1 // pred_fallthru
      _
    // Predicated region
    $region46: #{_residual_block_call.1} parent=1 // pred_check
      _
    $region47: #{_residual_block_call.1} parent=1 // pred_check_branch
      %86 = sbr.rel (0) target = $region49
    $region48: #{_residual_block_call.1} parent=1 // pred_region
      %87 = dma.done [#allocation11], 2048
    $region49: #{_residual_block_call.1} parent=1 // pred_fallthru
      _
    %p88 = scmp.eq.s32.totalorder 0, 0
    // Predicated region
    $region50: #{_residual_block_call.1} parent=1 // pred_check
      %p89 = pneg %p88
    $region51: #{_residual_block_call.1} parent=1 // pred_check_branch
      %91 = sbr.rel (%p89) target = $region53
    $region52: #{_residual_block_call.1} parent=1 // pred_region
      %92 = vst [vmem:[#allocation2] sm:$0xff] 0.0
      %93 = vst [vmem:[#allocation3] sm:$0xff] 0.0
    $region53: #{_residual_block_call.1} parent=1 // pred_fallthru
      _
    %v94 = vld [vmem:[%s0] sm:$0xff]
    %v95 = vld [vmem:[%s1] sm:$0xff]
    %v96 = vld [vmem:[#allocation4] sm:$0xff]
    %v97 = vld [vmem:[#allocation4 + $0x8] sm:$0xff]
    %v98 = vld [vmem:[#allocation4 + $0x10] sm:$0xff]
    %v99 = vld [vmem:[#allocation4 + $0x18] sm:$0xff]
    %v100 = vld [vmem:[#allocation4 + $0x20] sm:$0xff]
    %v101 = vld [vmem:[#allocation4 + $0x28] sm:$0xff]
    %v102 = vld [vmem:[#allocation4 + $0x30] sm:$0xff]
    %v103 = vld [vmem:[#allocation4 + $0x38] sm:$0xff]
    %v104 = vld [vmem:[#allocation4 + $0x40] sm:$0xff]
    %v105 = vld [vmem:[#allocation4 + $0x48] sm:$0xff]
    %v106 = vld [vmem:[#allocation4 + $0x50] sm:$0xff]
    %v107 = vld [vmem:[#allocation4 + $0x58] sm:$0xff]
    %v108 = vld [vmem:[#allocation4 + $0x60] sm:$0xff]
    %v109 = vld [vmem:[#allocation4 + $0x68] sm:$0xff]
    %v110 = vld [vmem:[#allocation4 + $0x70] sm:$0xff]
    %v111 = vld [vmem:[#allocation4 + $0x78] sm:$0xff]
    %v112 = vld [vmem:[#allocation7] sm:$0xff]
    %v113 = vld [vmem:[#allocation7 + $0x8] sm:$0xff]
    %v114 = vld [vmem:[#allocation7 + $0x10] sm:$0xff]
    %v115 = vld [vmem:[#allocation7 + $0x18] sm:$0xff]
    %v116 = vld [vmem:[#allocation7 + $0x20] sm:$0xff]
    %v117 = vld [vmem:[#allocation7 + $0x28] sm:$0xff]
    %v118 = vld [vmem:[#allocation7 + $0x30] sm:$0xff]
    %v119 = vld [vmem:[#allocation7 + $0x38] sm:$0xff]
    %v120 = vld [vmem:[#allocation7 + $0x40] sm:$0xff]
    %v121 = vld [vmem:[#allocation7 + $0x48] sm:$0xff]
    %v122 = vld [vmem:[#allocation7 + $0x50] sm:$0xff]
    %v123 = vld [vmem:[#allocation7 + $0x58] sm:$0xff]
    %v124 = vld [vmem:[#allocation7 + $0x60] sm:$0xff]
    %v125 = vld [vmem:[#allocation7 + $0x68] sm:$0xff]
    %v126 = vld [vmem:[#allocation7 + $0x70] sm:$0xff]
    %v127 = vld [vmem:[#allocation7 + $0x78] sm:$0xff]
    %128 = vmatprep.subr.mxu0 0.0
    %129 = vmatpush1.msra.mxu0 %v111
    %130 = vmatprep.subr.mxu0 0.0
    %131 = vmatpush1.msra.mxu0 %v110
    %132 = vmatprep.subr.mxu0 0.0
    %133 = vmatpush1.msra.mxu0 %v109
    %134 = vmatprep.subr.mxu0 0.0
    %135 = vmatpush1.msra.mxu0 %v108
    %136 = vmatprep.subr.mxu0 0.0
    %137 = vmatpush1.msra.mxu0 %v107
    %138 = vmatprep.subr.mxu0 0.0
    %139 = vmatpush1.msra.mxu0 %v106
    %140 = vmatprep.subr.mxu0 0.0
    %141 = vmatpush1.msra.mxu0 %v105
    %142 = vmatprep.subr.mxu0 0.0
    %143 = vmatpush1.msra.mxu0 %v104
    %144 = vmatprep.subr.mxu0 0.0
    %145 = vmatpush1.msra.mxu0 %v103
    %146 = vmatprep.subr.mxu0 0.0
    %147 = vmatpush1.msra.mxu0 %v102
    %148 = vmatprep.subr.mxu0 0.0
    %149 = vmatpush1.msra.mxu0 %v101
    %150 = vmatprep.subr.mxu0 0.0
    %151 = vmatpush1.msra.mxu0 %v100
    %152 = vmatprep.subr.mxu0 0.0
    %153 = vmatpush1.msra.mxu0 %v99
    %154 = vmatprep.subr.mxu0 0.0
    %155 = vmatpush1.msra.mxu0 %v98
    %156 = vmatprep.subr.mxu0 0.0
    %157 = vmatpush1.msra.mxu0 %v97
    %158 = vmatprep.subr.mxu0 0.0
    %159 = vmatpush1.msra.mxu0 %v96
    %160 = vmatprep.subr.mxu0 0.0
    %161 = vmatpush2.msra.mxu0 0.0
    %162 = vmatprep.subr.mxu0 0.0
    %163 = vmatpush2.msra.mxu0 0.0
    %164 = vmatprep.subr.mxu0 0.0
    %165 = vmatpush2.msra.mxu0 0.0
    %166 = vmatprep.subr.mxu0 0.0
    %167 = vmatpush2.msra.mxu0 0.0
    %168 = vmatprep.subr.mxu0 0.0
    %169 = vmatpush2.msra.mxu0 0.0
    %170 = vmatprep.subr.mxu0 0.0
    %171 = vmatpush2.msra.mxu0 0.0
    %172 = vmatprep.subr.mxu0 0.0
    %173 = vmatpush2.msra.mxu0 0.0
    %174 = vmatprep.subr.mxu0 0.0
    %175 = vmatpush2.msra.mxu0 0.0
    %176 = vmatprep.subr.mxu0 0.0
    %177 = vmatpush2.msra.mxu0 0.0
    %178 = vmatprep.subr.mxu0 0.0
    %179 = vmatpush2.msra.mxu0 0.0
    %180 = vmatprep.subr.mxu0 0.0
    %181 = vmatpush2.msra.mxu0 0.0
    %182 = vmatprep.subr.mxu0 0.0
    %183 = vmatpush2.msra.mxu0 0.0
    %184 = vmatprep.subr.mxu0 0.0
    %185 = vmatpush2.msra.mxu0 0.0
    %186 = vmatprep.subr.mxu0 0.0
    %187 = vmatpush2.msra.mxu0 0.0
    %188 = vmatprep.subr.mxu0 0.0
    %189 = vmatpush2.msra.mxu0 0.0
    %190 = vmatprep.subr.mxu0 0.0
    %191 = vmatpush2.msra.mxu0 0.0
    %192 = vmatprep.mubr.f32.mxu0 0.0
    %193 = vmatmul.mubr.f32.gmra.mxu0 %v94
    %v194 = vpop.f32.mrf.mxu0
    %v195 = vadd.f32 0.0, %v194
    %v196 = vpop.f32.mrf.mxu0
    %197 = vdwg.mxu0
    %198 = vmatprep.subr.mxu0 0.0
    %199 = vmatpush1.msra.mxu0 %v127
    %200 = vmatprep.subr.mxu0 0.0
    %201 = vmatpush1.msra.mxu0 %v126
    %202 = vmatprep.subr.mxu0 0.0
    %203 = vmatpush1.msra.mxu0 %v125
    %204 = vmatprep.subr.mxu0 0.0
    %205 = vmatpush1.msra.mxu0 %v124
    %206 = vmatprep.subr.mxu0 0.0
    %207 = vmatpush1.msra.mxu0 %v123
    %208 = vmatprep.subr.mxu0 0.0
    %209 = vmatpush1.msra.mxu0 %v122
    %210 = vmatprep.subr.mxu0 0.0
    %211 = vmatpush1.msra.mxu0 %v121
    %212 = vmatprep.subr.mxu0 0.0
    %213 = vmatpush1.msra.mxu0 %v120
    %214 = vmatprep.subr.mxu0 0.0
    %215 = vmatpush1.msra.mxu0 %v119
    %216 = vmatprep.subr.mxu0 0.0
    %217 = vmatpush1.msra.mxu0 %v118
    %218 = vmatprep.subr.mxu0 0.0
    %219 = vmatpush1.msra.mxu0 %v117
    %220 = vmatprep.subr.mxu0 0.0
    %221 = vmatpush1.msra.mxu0 %v116
    %222 = vmatprep.subr.mxu0 0.0
    %223 = vmatpush1.msra.mxu0 %v115
    %224 = vmatprep.subr.mxu0 0.0
    %225 = vmatpush1.msra.mxu0 %v114
    %226 = vmatprep.subr.mxu0 0.0
    %227 = vmatpush1.msra.mxu0 %v113
    %228 = vmatprep.subr.mxu0 0.0
    %229 = vmatpush1.msra.mxu0 %v112
    %230 = vmatprep.subr.mxu0 0.0
    %231 = vmatpush2.msra.mxu0 0.0
    %232 = vmatprep.subr.mxu0 0.0
    %233 = vmatpush2.msra.mxu0 0.0
    %234 = vmatprep.subr.mxu0 0.0
    %235 = vmatpush2.msra.mxu0 0.0
    %236 = vmatprep.subr.mxu0 0.0
    %237 = vmatpush2.msra.mxu0 0.0
    %238 = vmatprep.subr.mxu0 0.0
    %239 = vmatpush2.msra.mxu0 0.0
    %240 = vmatprep.subr.mxu0 0.0
    %241 = vmatpush2.msra.mxu0 0.0
    %242 = vmatprep.subr.mxu0 0.0
    %243 = vmatpush2.msra.mxu0 0.0
    %244 = vmatprep.subr.mxu0 0.0
    %245 = vmatpush2.msra.mxu0 0.0
    %246 = vmatprep.subr.mxu0 0.0
    %247 = vmatpush2.msra.mxu0 0.0
    %248 = vmatprep.subr.mxu0 0.0
    %249 = vmatpush2.msra.mxu0 0.0
    %250 = vmatprep.subr.mxu0 0.0
    %251 = vmatpush2.msra.mxu0 0.0
    %252 = vmatprep.subr.mxu0 0.0
    %253 = vmatpush2.msra.mxu0 0.0
    %254 = vmatprep.subr.mxu0 0.0
    %255 = vmatpush2.msra.mxu0 0.0
    %256 = vmatprep.subr.mxu0 0.0
    %257 = vmatpush2.msra.mxu0 0.0
    %258 = vmatprep.subr.mxu0 0.0
    %259 = vmatpush2.msra.mxu0 0.0
    %260 = vmatprep.subr.mxu0 0.0
    %261 = vmatpush2.msra.mxu0 0.0
    %262 = vmatprep.mubr.f32.mxu0 0.0
    %263 = vmatmul.mubr.f32.gmra.mxu0 %v95
    %v264 = vpop.f32.mrf.mxu0
    %v265 = vadd.f32 0.0, %v264
    %v266 = vpop.f32.mrf.mxu0
    %267 = vdwg.mxu0
    %v268 = vsub.f32 %v195, %v265
    %269 = vmatprep.subr.mxu0 0.0
    %270 = vmatpush1.msra.mxu0 %v111
    %271 = vmatprep.subr.mxu0 0.0
    %272 = vmatpush1.msra.mxu0 %v110
    %273 = vmatprep.subr.mxu0 0.0
    %274 = vmatpush1.msra.mxu0 %v109
    %275 = vmatprep.subr.mxu0 0.0
    %276 = vmatpush1.msra.mxu0 %v108
    %277 = vmatprep.subr.mxu0 0.0
    %278 = vmatpush1.msra.mxu0 %v107
    %279 = vmatprep.subr.mxu0 0.0
    %280 = vmatpush1.msra.mxu0 %v106
    %281 = vmatprep.subr.mxu0 0.0
    %282 = vmatpush1.msra.mxu0 %v105
    %283 = vmatprep.subr.mxu0 0.0
    %284 = vmatpush1.msra.mxu0 %v104
    %285 = vmatprep.subr.mxu0 0.0
    %286 = vmatpush1.msra.mxu0 %v103
    %287 = vmatprep.subr.mxu0 0.0
    %288 = vmatpush1.msra.mxu0 %v102
    %289 = vmatprep.subr.mxu0 0.0
    %290 = vmatpush1.msra.mxu0 %v101
    %291 = vmatprep.subr.mxu0 0.0
    %292 = vmatpush1.msra.mxu0 %v100
    %293 = vmatprep.subr.mxu0 0.0
    %294 = vmatpush1.msra.mxu0 %v99
    %295 = vmatprep.subr.mxu0 0.0
    %296 = vmatpush1.msra.mxu0 %v98
    %297 = vmatprep.subr.mxu0 0.0
    %298 = vmatpush1.msra.mxu0 %v97
    %299 = vmatprep.subr.mxu0 0.0
    %300 = vmatpush1.msra.mxu0 %v96
    %301 = vmatprep.subr.mxu0 0.0
    %302 = vmatpush2.msra.mxu0 0.0
    %303 = vmatprep.subr.mxu0 0.0
    %304 = vmatpush2.msra.mxu0 0.0
    %305 = vmatprep.subr.mxu0 0.0
    %306 = vmatpush2.msra.mxu0 0.0
    %307 = vmatprep.subr.mxu0 0.0
    %308 = vmatpush2.msra.mxu0 0.0
    %309 = vmatprep.subr.mxu0 0.0
    %310 = vmatpush2.msra.mxu0 0.0
    %311 = vmatprep.subr.mxu0 0.0
    %312 = vmatpush2.msra.mxu0 0.0
    %313 = vmatprep.subr.mxu0 0.0
    %314 = vmatpush2.msra.mxu0 0.0
    %315 = vmatprep.subr.mxu0 0.0
    %316 = vmatpush2.msra.mxu0 0.0
    %317 = vmatprep.subr.mxu0 0.0
    %318 = vmatpush2.msra.mxu0 0.0
    %319 = vmatprep.subr.mxu0 0.0
    %320 = vmatpush2.msra.mxu0 0.0
    %321 = vmatprep.subr.mxu0 0.0
    %322 = vmatpush2.msra.mxu0 0.0
    %323 = vmatprep.subr.mxu0 0.0
    %324 = vmatpush2.msra.mxu0 0.0
    %325 = vmatprep.subr.mxu0 0.0
    %326 = vmatpush2.msra.mxu0 0.0
    %327 = vmatprep.subr.mxu0 0.0
    %328 = vmatpush2.msra.mxu0 0.0
    %329 = vmatprep.subr.mxu0 0.0
    %330 = vmatpush2.msra.mxu0 0.0
    %331 = vmatprep.subr.mxu0 0.0
    %332 = vmatpush2.msra.mxu0 0.0
    %333 = vmatprep.mubr.f32.mxu0 0.0
    %334 = vmatmul.mubr.f32.gmra.mxu0 %v95
    %v335 = vpop.f32.mrf.mxu0
    %v336 = vadd.f32 0.0, %v335
    %v337 = vpop.f32.mrf.mxu0
    %338 = vdwg.mxu0
    %339 = vmatprep.subr.mxu0 0.0
    %340 = vmatpush1.msra.mxu0 %v127
    %341 = vmatprep.subr.mxu0 0.0
    %342 = vmatpush1.msra.mxu0 %v126
    %343 = vmatprep.subr.mxu0 0.0
    %344 = vmatpush1.msra.mxu0 %v125
    %345 = vmatprep.subr.mxu0 0.0
    %346 = vmatpush1.msra.mxu0 %v124
    %347 = vmatprep.subr.mxu0 0.0
    %348 = vmatpush1.msra.mxu0 %v123
    %349 = vmatprep.subr.mxu0 0.0
    %350 = vmatpush1.msra.mxu0 %v122
    %351 = vmatprep.subr.mxu0 0.0
    %352 = vmatpush1.msra.mxu0 %v121
    %353 = vmatprep.subr.mxu0 0.0
    %354 = vmatpush1.msra.mxu0 %v120
    %355 = vmatprep.subr.mxu0 0.0
    %356 = vmatpush1.msra.mxu0 %v119
    %357 = vmatprep.subr.mxu0 0.0
    %358 = vmatpush1.msra.mxu0 %v118
    %359 = vmatprep.subr.mxu0 0.0
    %360 = vmatpush1.msra.mxu0 %v117
    %361 = vmatprep.subr.mxu0 0.0
    %362 = vmatpush1.msra.mxu0 %v116
    %363 = vmatprep.subr.mxu0 0.0
    %364 = vmatpush1.msra.mxu0 %v115
    %365 = vmatprep.subr.mxu0 0.0
    %366 = vmatpush1.msra.mxu0 %v114
    %367 = vmatprep.subr.mxu0 0.0
    %368 = vmatpush1.msra.mxu0 %v113
    %369 = vmatprep.subr.mxu0 0.0
    %370 = vmatpush1.msra.mxu0 %v112
    %371 = vmatprep.subr.mxu0 0.0
    %372 = vmatpush2.msra.mxu0 0.0
    %373 = vmatprep.subr.mxu0 0.0
    %374 = vmatpush2.msra.mxu0 0.0
    %375 = vmatprep.subr.mxu0 0.0
    %376 = vmatpush2.msra.mxu0 0.0
    %377 = vmatprep.subr.mxu0 0.0
    %378 = vmatpush2.msra.mxu0 0.0
    %379 = vmatprep.subr.mxu0 0.0
    %380 = vmatpush2.msra.mxu0 0.0
    %381 = vmatprep.subr.mxu0 0.0
    %382 = vmatpush2.msra.mxu0 0.0
    %383 = vmatprep.subr.mxu0 0.0
    %384 = vmatpush2.msra.mxu0 0.0
    %385 = vmatprep.subr.mxu0 0.0
    %386 = vmatpush2.msra.mxu0 0.0
    %387 = vmatprep.subr.mxu0 0.0
    %388 = vmatpush2.msra.mxu0 0.0
    %389 = vmatprep.subr.mxu0 0.0
    %390 = vmatpush2.msra.mxu0 0.0
    %391 = vmatprep.subr.mxu0 0.0
    %392 = vmatpush2.msra.mxu0 0.0
    %393 = vmatprep.subr.mxu0 0.0
    %394 = vmatpush2.msra.mxu0 0.0
    %395 = vmatprep.subr.mxu0 0.0
    %396 = vmatpush2.msra.mxu0 0.0
    %397 = vmatprep.subr.mxu0 0.0
    %398 = vmatpush2.msra.mxu0 0.0
    %399 = vmatprep.subr.mxu0 0.0
    %400 = vmatpush2.msra.mxu0 0.0
    %401 = vmatprep.subr.mxu0 0.0
    %402 = vmatpush2.msra.mxu0 0.0
    %403 = vmatprep.mubr.f32.mxu0 0.0
    %404 = vmatmul.mubr.f32.gmra.mxu0 %v94
    %v405 = vpop.f32.mrf.mxu0
    %v406 = vadd.f32 %v336, %v405
    %v407 = vpop.f32.mrf.mxu0
    %408 = vdwg.mxu0
    %v409 = vld [vmem:[%s6] sm:$0x1]
    %v410 = vld [vmem:[%s6 + $0x2] sm:$0x1]
    %v411 = vrot.slane %v268, 4
    %v412 = vadd.f32 %v268, %v411
    %v413 = vrot.slane %v412, 2
    %v414 = vadd.f32 %v412, %v413
    %v415 = vrot.slane %v414, 1
    %v416 = vadd.f32 %v414, %v415
    %v417 = vmul.f32 %v268, %v268
    %v418 = vrot.slane %v417, 4
    %v419 = vadd.f32 %v417, %v418
    %v420 = vrot.slane %v419, 2
    %v421 = vadd.f32 %v419, %v420
    %v422 = vrot.slane %v421, 1
    %v423 = vadd.f32 %v421, %v422
    %v424 = vmul.f32 %v416, 0.125
    %v425 = vmul.f32 %v423, 0.125
    %v426 = vmul.f32 %v424, %v424
    %v427 = vsub.f32 %v425, %v426
    %v428 = vsub.f32 %v268, %v424
    %v429 = vadd.f32 %v427, 1e-05
    %v430 = vrsqrt.pop %v429
    %v431 = vmul.f32 %v430, %v409
    %v432 = vlaneseq
    %v433 = vshrl.u32 %v432, 7
    %v434 = vsub.s32 0, %v433
    %v435 = vrot.slane %v431, %v434
    %v436 = vmul.f32 %v428, %v435
    %v437 = vlaneseq
    %v438 = vshrl.u32 %v437, 7
    %v439 = vsub.s32 0, %v438
    %v440 = vrot.slane %v410, %v439
    %v441 = vadd.f32 %v436, %v440
    %v442 = vld [vmem:[%s6 + $0x1] sm:$0x1]
    %v443 = vld [vmem:[%s6 + $0x3] sm:$0x1]
    %v444 = vrot.slane %v406, 4
    %v445 = vadd.f32 %v406, %v444
    %v446 = vrot.slane %v445, 2
    %v447 = vadd.f32 %v445, %v446
    %v448 = vrot.slane %v447, 1
    %v449 = vadd.f32 %v447, %v448
    %v450 = vmul.f32 %v406, %v406
    %v451 = vrot.slane %v450, 4
    %v452 = vadd.f32 %v450, %v451
    %v453 = vrot.slane %v452, 2
    %v454 = vadd.f32 %v452, %v453
    %v455 = vrot.slane %v454, 1
    %v456 = vadd.f32 %v454, %v455
    %v457 = vmul.f32 %v449, 0.125
    %v458 = vmul.f32 %v456, 0.125
    %v459 = vmul.f32 %v457, %v457
    %v460 = vsub.f32 %v458, %v459
    %v461 = vsub.f32 %v406, %v457
    %v462 = vadd.f32 %v460, 1e-05
    %v463 = vrsqrt.pop %v462
    %v464 = vmul.f32 %v463, %v442
    %v465 = vlaneseq
    %v466 = vshrl.u32 %v465, 7
    %v467 = vsub.s32 0, %v466
    %v468 = vrot.slane %v464, %v467
    %v469 = vmul.f32 %v461, %v468
    %v470 = vlaneseq
    %v471 = vshrl.u32 %v470, 7
    %v472 = vsub.s32 0, %v471
    %v473 = vrot.slane %v443, %v472
    %v474 = vadd.f32 %v469, %v473
    %v475 = vld [vmem:[%s6 + $0x4] sm:$0x1]
    %v476 = vmul.f32 %v441, %v441
    %v477 = vmul.f32 %v474, %v474
    %v478 = vadd.f32 %v476, %v477
    %v479 = vadd.f32 %v478, 1e-09
    %v480 = vrsqrt.pop %v479
    %v481 = vlaneseq
    %v482 = vshrl.u32 %v481, 7
    %v483 = vsub.s32 0, %v482
    %v484 = vrot.slane %v475, %v483
    %v485 = vmul.f32 %v484, %v480
    %v486 = vadd.f32 %v485, 1.0
    %v487 = vmax.f32 %v486, 0.0
    %v488 = vmul.f32 %v487, %v441
    %v489 = vmul.f32 %v487, %v474
    %v490 = vld [vmem:[#allocation9] sm:$0xff]
    %v491 = vld [vmem:[#allocation9 + $0x8] sm:$0xff]
    %v492 = vld [vmem:[#allocation9 + $0x10] sm:$0xff]
    %v493 = vld [vmem:[#allocation9 + $0x18] sm:$0xff]
    %v494 = vld [vmem:[#allocation9 + $0x20] sm:$0xff]
    %v495 = vld [vmem:[#allocation9 + $0x28] sm:$0xff]
    %v496 = vld [vmem:[#allocation9 + $0x30] sm:$0xff]
    %v497 = vld [vmem:[#allocation9 + $0x38] sm:$0xff]
    %v498 = vld [vmem:[#allocation9 + $0x40] sm:$0xff]
    %v499 = vld [vmem:[#allocation9 + $0x48] sm:$0xff]
    %v500 = vld [vmem:[#allocation9 + $0x50] sm:$0xff]
    %v501 = vld [vmem:[#allocation9 + $0x58] sm:$0xff]
    %v502 = vld [vmem:[#allocation9 + $0x60] sm:$0xff]
    %v503 = vld [vmem:[#allocation9 + $0x68] sm:$0xff]
    %v504 = vld [vmem:[#allocation9 + $0x70] sm:$0xff]
    %v505 = vld [vmem:[#allocation9 + $0x78] sm:$0xff]
    %v506 = vld [vmem:[#allocation10] sm:$0xff]
    %v507 = vld [vmem:[#allocation10 + $0x8] sm:$0xff]
    %v508 = vld [vmem:[#allocation10 + $0x10] sm:$0xff]
    %v509 = vld [vmem:[#allocation10 + $0x18] sm:$0xff]
    %v510 = vld [vmem:[#allocation10 + $0x20] sm:$0xff]
    %v511 = vld [vmem:[#allocation10 + $0x28] sm:$0xff]
    %v512 = vld [vmem:[#allocation10 + $0x30] sm:$0xff]
    %v513 = vld [vmem:[#allocation10 + $0x38] sm:$0xff]
    %v514 = vld [vmem:[#allocation10 + $0x40] sm:$0xff]
    %v515 = vld [vmem:[#allocation10 + $0x48] sm:$0xff]
    %v516 = vld [vmem:[#allocation10 + $0x50] sm:$0xff]
    %v517 = vld [vmem:[#allocation10 + $0x58] sm:$0xff]
    %v518 = vld [vmem:[#allocation10 + $0x60] sm:$0xff]
    %v519 = vld [vmem:[#allocation10 + $0x68] sm:$0xff]
    %v520 = vld [vmem:[#allocation10 + $0x70] sm:$0xff]
    %v521 = vld [vmem:[#allocation10 + $0x78] sm:$0xff]
    %v522 = vld [vmem:[#allocation2] sm:$0xff]
    %523 = vmatprep.subr.mxu0 0.0
    %524 = vmatpush1.msra.mxu0 %v505
    %525 = vmatprep.subr.mxu0 0.0
    %526 = vmatpush1.msra.mxu0 %v504
    %527 = vmatprep.subr.mxu0 0.0
    %528 = vmatpush1.msra.mxu0 %v503
    %529 = vmatprep.subr.mxu0 0.0
    %530 = vmatpush1.msra.mxu0 %v502
    %531 = vmatprep.subr.mxu0 0.0
    %532 = vmatpush1.msra.mxu0 %v501
    %533 = vmatprep.subr.mxu0 0.0
    %534 = vmatpush1.msra.mxu0 %v500
    %535 = vmatprep.subr.mxu0 0.0
    %536 = vmatpush1.msra.mxu0 %v499
    %537 = vmatprep.subr.mxu0 0.0
    %538 = vmatpush1.msra.mxu0 %v498
    %539 = vmatprep.subr.mxu0 0.0
    %540 = vmatpush1.msra.mxu0 %v497
    %541 = vmatprep.subr.mxu0 0.0
    %542 = vmatpush1.msra.mxu0 %v496
    %543 = vmatprep.subr.mxu0 0.0
    %544 = vmatpush1.msra.mxu0 %v495
    %545 = vmatprep.subr.mxu0 0.0
    %546 = vmatpush1.msra.mxu0 %v494
    %547 = vmatprep.subr.mxu0 0.0
    %548 = vmatpush1.msra.mxu0 %v493
    %549 = vmatprep.subr.mxu0 0.0
    %550 = vmatpush1.msra.mxu0 %v492
    %551 = vmatprep.subr.mxu0 0.0
    %552 = vmatpush1.msra.mxu0 %v491
    %553 = vmatprep.subr.mxu0 0.0
    %554 = vmatpush1.msra.mxu0 %v490
    %555 = vmatprep.subr.mxu0 0.0
    %556 = vmatpush2.msra.mxu0 0.0
    %557 = vmatprep.subr.mxu0 0.0
    %558 = vmatpush2.msra.mxu0 0.0
    %559 = vmatprep.subr.mxu0 0.0
    %560 = vmatpush2.msra.mxu0 0.0
    %561 = vmatprep.subr.mxu0 0.0
    %562 = vmatpush2.msra.mxu0 0.0
    %563 = vmatprep.subr.mxu0 0.0
    %564 = vmatpush2.msra.mxu0 0.0
    %565 = vmatprep.subr.mxu0 0.0
    %566 = vmatpush2.msra.mxu0 0.0
    %567 = vmatprep.subr.mxu0 0.0
    %568 = vmatpush2.msra.mxu0 0.0
    %569 = vmatprep.subr.mxu0 0.0
    %570 = vmatpush2.msra.mxu0 0.0
    %571 = vmatprep.subr.mxu0 0.0
    %572 = vmatpush2.msra.mxu0 0.0
    %573 = vmatprep.subr.mxu0 0.0
    %574 = vmatpush2.msra.mxu0 0.0
    %575 = vmatprep.subr.mxu0 0.0
    %576 = vmatpush2.msra.mxu0 0.0
    %577 = vmatprep.subr.mxu0 0.0
    %578 = vmatpush2.msra.mxu0 0.0
    %579 = vmatprep.subr.mxu0 0.0
    %580 = vmatpush2.msra.mxu0 0.0
    %581 = vmatprep.subr.mxu0 0.0
    %582 = vmatpush2.msra.mxu0 0.0
    %583 = vmatprep.subr.mxu0 0.0
    %584 = vmatpush2.msra.mxu0 0.0
    %585 = vmatprep.subr.mxu0 0.0
    %586 = vmatpush2.msra.mxu0 0.0
    %587 = vmatprep.mubr.f32.mxu0 0.0
    %588 = vmatmul.mubr.f32.gmra.mxu0 %v488
    %v589 = vpop.f32.mrf.mxu0
    %v590 = vadd.f32 0.0, %v589
    %v591 = vpop.f32.mrf.mxu0
    %592 = vdwg.mxu0
    %593 = vmatprep.subr.mxu0 0.0
    %594 = vmatpush1.msra.mxu0 %v521
    %595 = vmatprep.subr.mxu0 0.0
    %596 = vmatpush1.msra.mxu0 %v520
    %597 = vmatprep.subr.mxu0 0.0
    %598 = vmatpush1.msra.mxu0 %v519
    %599 = vmatprep.subr.mxu0 0.0
    %600 = vmatpush1.msra.mxu0 %v518
    %601 = vmatprep.subr.mxu0 0.0
    %602 = vmatpush1.msra.mxu0 %v517
    %603 = vmatprep.subr.mxu0 0.0
    %604 = vmatpush1.msra.mxu0 %v516
    %605 = vmatprep.subr.mxu0 0.0
    %606 = vmatpush1.msra.mxu0 %v515
    %607 = vmatprep.subr.mxu0 0.0
    %608 = vmatpush1.msra.mxu0 %v514
    %609 = vmatprep.subr.mxu0 0.0
    %610 = vmatpush1.msra.mxu0 %v513
    %611 = vmatprep.subr.mxu0 0.0
    %612 = vmatpush1.msra.mxu0 %v512
    %613 = vmatprep.subr.mxu0 0.0
    %614 = vmatpush1.msra.mxu0 %v511
    %615 = vmatprep.subr.mxu0 0.0
    %616 = vmatpush1.msra.mxu0 %v510
    %617 = vmatprep.subr.mxu0 0.0
    %618 = vmatpush1.msra.mxu0 %v509
    %619 = vmatprep.subr.mxu0 0.0
    %620 = vmatpush1.msra.mxu0 %v508
    %621 = vmatprep.subr.mxu0 0.0
    %622 = vmatpush1.msra.mxu0 %v507
    %623 = vmatprep.subr.mxu0 0.0
    %624 = vmatpush1.msra.mxu0 %v506
    %625 = vmatprep.subr.mxu0 0.0
    %626 = vmatpush2.msra.mxu0 0.0
    %627 = vmatprep.subr.mxu0 0.0
    %628 = vmatpush2.msra.mxu0 0.0
    %629 = vmatprep.subr.mxu0 0.0
    %630 = vmatpush2.msra.mxu0 0.0
    %631 = vmatprep.subr.mxu0 0.0
    %632 = vmatpush2.msra.mxu0 0.0
    %633 = vmatprep.subr.mxu0 0.0
    %634 = vmatpush2.msra.mxu0 0.0
    %635 = vmatprep.subr.mxu0 0.0
    %636 = vmatpush2.msra.mxu0 0.0
    %637 = vmatprep.subr.mxu0 0.0
    %638 = vmatpush2.msra.mxu0 0.0
    %639 = vmatprep.subr.mxu0 0.0
    %640 = vmatpush2.msra.mxu0 0.0
    %641 = vmatprep.subr.mxu0 0.0
    %642 = vmatpush2.msra.mxu0 0.0
    %643 = vmatprep.subr.mxu0 0.0
    %644 = vmatpush2.msra.mxu0 0.0
    %645 = vmatprep.subr.mxu0 0.0
    %646 = vmatpush2.msra.mxu0 0.0
    %647 = vmatprep.subr.mxu0 0.0
    %648 = vmatpush2.msra.mxu0 0.0
    %649 = vmatprep.subr.mxu0 0.0
    %650 = vmatpush2.msra.mxu0 0.0
    %651 = vmatprep.subr.mxu0 0.0
    %652 = vmatpush2.msra.mxu0 0.0
    %653 = vmatprep.subr.mxu0 0.0
    %654 = vmatpush2.msra.mxu0 0.0
    %655 = vmatprep.subr.mxu0 0.0
    %656 = vmatpush2.msra.mxu0 0.0
    %657 = vmatprep.mubr.f32.mxu0 0.0
    %658 = vmatmul.mubr.f32.gmra.mxu0 %v489
    %v659 = vpop.f32.mrf.mxu0
    %v660 = vadd.f32 0.0, %v659
    %v661 = vpop.f32.mrf.mxu0
    %662 = vdwg.mxu0
    %v663 = vsub.f32 %v590, %v660
    %v664 = vadd.f32 %v522, %v663
    %665 = vst [vmem:[#allocation2] sm:$0xff] %v664
    %v666 = vld [vmem:[#allocation3] sm:$0xff]
    %667 = vmatprep.subr.mxu0 0.0
    %668 = vmatpush1.msra.mxu0 %v505
    %669 = vmatprep.subr.mxu0 0.0
    %670 = vmatpush1.msra.mxu0 %v504
    %671 = vmatprep.subr.mxu0 0.0
    %672 = vmatpush1.msra.mxu0 %v503
    %673 = vmatprep.subr.mxu0 0.0
    %674 = vmatpush1.msra.mxu0 %v502
    %675 = vmatprep.subr.mxu0 0.0
    %676 = vmatpush1.msra.mxu0 %v501
    %677 = vmatprep.subr.mxu0 0.0
    %678 = vmatpush1.msra.mxu0 %v500
    %679 = vmatprep.subr.mxu0 0.0
    %680 = vmatpush1.msra.mxu0 %v499
    %681 = vmatprep.subr.mxu0 0.0
    %682 = vmatpush1.msra.mxu0 %v498
    %683 = vmatprep.subr.mxu0 0.0
    %684 = vmatpush1.msra.mxu0 %v497
    %685 = vmatprep.subr.mxu0 0.0
    %686 = vmatpush1.msra.mxu0 %v496
    %687 = vmatprep.subr.mxu0 0.0
    %688 = vmatpush1.msra.mxu0 %v495
    %689 = vmatprep.subr.mxu0 0.0
    %690 = vmatpush1.msra.mxu0 %v494
    %691 = vmatprep.subr.mxu0 0.0
    %692 = vmatpush1.msra.mxu0 %v493
    %693 = vmatprep.subr.mxu0 0.0
    %694 = vmatpush1.msra.mxu0 %v492
    %695 = vmatprep.subr.mxu0 0.0
    %696 = vmatpush1.msra.mxu0 %v491
    %697 = vmatprep.subr.mxu0 0.0
    %698 = vmatpush1.msra.mxu0 %v490
    %699 = vmatprep.subr.mxu0 0.0
    %700 = vmatpush2.msra.mxu0 0.0
    %701 = vmatprep.subr.mxu0 0.0
    %702 = vmatpush2.msra.mxu0 0.0
    %703 = vmatprep.subr.mxu0 0.0
    %704 = vmatpush2.msra.mxu0 0.0
    %705 = vmatprep.subr.mxu0 0.0
    %706 = vmatpush2.msra.mxu0 0.0
    %707 = vmatprep.subr.mxu0 0.0
    %708 = vmatpush2.msra.mxu0 0.0
    %709 = vmatprep.subr.mxu0 0.0
    %710 = vmatpush2.msra.mxu0 0.0
    %711 = vmatprep.subr.mxu0 0.0
    %712 = vmatpush2.msra.mxu0 0.0
    %713 = vmatprep.subr.mxu0 0.0
    %714 = vmatpush2.msra.mxu0 0.0
    %715 = vmatprep.subr.mxu0 0.0
    %716 = vmatpush2.msra.mxu0 0.0
    %717 = vmatprep.subr.mxu0 0.0
    %718 = vmatpush2.msra.mxu0 0.0
    %719 = vmatprep.subr.mxu0 0.0
    %720 = vmatpush2.msra.mxu0 0.0
    %721 = vmatprep.subr.mxu0 0.0
    %722 = vmatpush2.msra.mxu0 0.0
    %723 = vmatprep.subr.mxu0 0.0
    %724 = vmatpush2.msra.mxu0 0.0
    %725 = vmatprep.subr.mxu0 0.0
    %726 = vmatpush2.msra.mxu0 0.0
    %727 = vmatprep.subr.mxu0 0.0
    %728 = vmatpush2.msra.mxu0 0.0
    %729 = vmatprep.subr.mxu0 0.0
    %730 = vmatpush2.msra.mxu0 0.0
    %731 = vmatprep.mubr.f32.mxu0 0.0
    %732 = vmatmul.mubr.f32.gmra.mxu0 %v489
    %v733 = vpop.f32.mrf.mxu0
    %v734 = vadd.f32 0.0, %v733
    %v735 = vpop.f32.mrf.mxu0
    %736 = vdwg.mxu0
    %737 = vmatprep.subr.mxu0 0.0
    %738 = vmatpush1.msra.mxu0 %v521
    %739 = vmatprep.subr.mxu0 0.0
    %740 = vmatpush1.msra.mxu0 %v520
    %741 = vmatprep.subr.mxu0 0.0
    %742 = vmatpush1.msra.mxu0 %v519
    %743 = vmatprep.subr.mxu0 0.0
    %744 = vmatpush1.msra.mxu0 %v518
    %745 = vmatprep.subr.mxu0 0.0
    %746 = vmatpush1.msra.mxu0 %v517
    %747 = vmatprep.subr.mxu0 0.0
    %748 = vmatpush1.msra.mxu0 %v516
    %749 = vmatprep.subr.mxu0 0.0
    %750 = vmatpush1.msra.mxu0 %v515
    %751 = vmatprep.subr.mxu0 0.0
    %752 = vmatpush1.msra.mxu0 %v514
    %753 = vmatprep.subr.mxu0 0.0
    %754 = vmatpush1.msra.mxu0 %v513
    %755 = vmatprep.subr.mxu0 0.0
    %756 = vmatpush1.msra.mxu0 %v512
    %757 = vmatprep.subr.mxu0 0.0
    %758 = vmatpush1.msra.mxu0 %v511
    %759 = vmatprep.subr.mxu0 0.0
    %760 = vmatpush1.msra.mxu0 %v510
    %761 = vmatprep.subr.mxu0 0.0
    %762 = vmatpush1.msra.mxu0 %v509
    %763 = vmatprep.subr.mxu0 0.0
    %764 = vmatpush1.msra.mxu0 %v508
    %765 = vmatprep.subr.mxu0 0.0
    %766 = vmatpush1.msra.mxu0 %v507
    %767 = vmatprep.subr.mxu0 0.0
    %768 = vmatpush1.msra.mxu0 %v506
    %769 = vmatprep.subr.mxu0 0.0
    %770 = vmatpush2.msra.mxu0 0.0
    %771 = vmatprep.subr.mxu0 0.0
    %772 = vmatpush2.msra.mxu0 0.0
    %773 = vmatprep.subr.mxu0 0.0
    %774 = vmatpush2.msra.mxu0 0.0
    %775 = vmatprep.subr.mxu0 0.0
    %776 = vmatpush2.msra.mxu0 0.0
    %777 = vmatprep.subr.mxu0 0.0
    %778 = vmatpush2.msra.mxu0 0.0
    %779 = vmatprep.subr.mxu0 0.0
    %780 = vmatpush2.msra.mxu0 0.0
    %781 = vmatprep.subr.mxu0 0.0
    %782 = vmatpush2.msra.mxu0 0.0
    %783 = vmatprep.subr.mxu0 0.0
    %784 = vmatpush2.msra.mxu0 0.0
    %785 = vmatprep.subr.mxu0 0.0
    %786 = vmatpush2.msra.mxu0 0.0
    %787 = vmatprep.subr.mxu0 0.0
    %788 = vmatpush2.msra.mxu0 0.0
    %789 = vmatprep.subr.mxu0 0.0
    %790 = vmatpush2.msra.mxu0 0.0
    %791 = vmatprep.subr.mxu0 0.0
    %792 = vmatpush2.msra.mxu0 0.0
    %793 = vmatprep.subr.mxu0 0.0
    %794 = vmatpush2.msra.mxu0 0.0
    %795 = vmatprep.subr.mxu0 0.0
    %796 = vmatpush2.msra.mxu0 0.0
    %797 = vmatprep.subr.mxu0 0.0
    %798 = vmatpush2.msra.mxu0 0.0
    %799 = vmatprep.subr.mxu0 0.0
    %800 = vmatpush2.msra.mxu0 0.0
    %801 = vmatprep.mubr.f32.mxu0 0.0
    %802 = vmatmul.mubr.f32.gmra.mxu0 %v488
    %v803 = vpop.f32.mrf.mxu0
    %v804 = vadd.f32 %v734, %v803
    %v805 = vpop.f32.mrf.mxu0
    %806 = vdwg.mxu0
    %v807 = vadd.f32 %v666, %v804
    %808 = vst [vmem:[#allocation3] sm:$0xff] %v807
    // Predicated region
    $region54: #{_residual_block_call.1} parent=1 // pred_check
      %p809 = pneg %p88
    $region55: #{_residual_block_call.1} parent=1 // pred_check_branch
      %811 = sbr.rel (%p809) target = $region57
    $region56: #{_residual_block_call.1} parent=1 // pred_region
      %v812 = vld [vmem:[#allocation2] sm:$0xff]
      %v813 = vld [vmem:[%s7] sm:$0x1]
      %v814 = vld [vmem:[%s7 + $0x2] sm:$0x1]
      %v815 = vrot.slane %v812, 4
      %v816 = vadd.f32 %v812, %v815
      %v817 = vrot.slane %v816, 2
      %v818 = vadd.f32 %v816, %v817
      %v819 = vrot.slane %v818, 1
      %v820 = vadd.f32 %v818, %v819
      %v821 = vmul.f32 %v812, %v812
      %v822 = vrot.slane %v821, 4
      %v823 = vadd.f32 %v821, %v822
      %v824 = vrot.slane %v823, 2
      %v825 = vadd.f32 %v823, %v824
      %v826 = vrot.slane %v825, 1
      %v827 = vadd.f32 %v825, %v826
      %v828 = vmul.f32 %v820, 0.125
      %v829 = vmul.f32 %v827, 0.125
      %v830 = vmul.f32 %v828, %v828
      %v831 = vsub.f32 %v829, %v830
      %v832 = vsub.f32 %v812, %v828
      %v833 = vadd.f32 %v831, 1e-05
      %v834 = vrsqrt.pop %v833
      %v835 = vmul.f32 %v834, %v813
      %v836 = vlaneseq
      %v837 = vshrl.u32 %v836, 7
      %v838 = vsub.s32 0, %v837
      %v839 = vrot.slane %v835, %v838
      %v840 = vmul.f32 %v832, %v839
      %v841 = vlaneseq
      %v842 = vshrl.u32 %v841, 7
      %v843 = vsub.s32 0, %v842
      %v844 = vrot.slane %v814, %v843
      %v845 = vadd.f32 %v840, %v844
      %v846 = vadd.f32 %v845, %v94
      %v847 = vld [vmem:[#allocation3] sm:$0xff]
      %v848 = vld [vmem:[%s7 + $0x1] sm:$0x1]
      %v849 = vld [vmem:[%s7 + $0x3] sm:$0x1]
      %v850 = vrot.slane %v847, 4
      %v851 = vadd.f32 %v847, %v850
      %v852 = vrot.slane %v851, 2
      %v853 = vadd.f32 %v851, %v852
      %v854 = vrot.slane %v853, 1
      %v855 = vadd.f32 %v853, %v854
      %v856 = vmul.f32 %v847, %v847
      %v857 = vrot.slane %v856, 4
      %v858 = vadd.f32 %v856, %v857
      %v859 = vrot.slane %v858, 2
      %v860 = vadd.f32 %v858, %v859
      %v861 = vrot.slane %v860, 1
      %v862 = vadd.f32 %v860, %v861
      %v863 = vmul.f32 %v855, 0.125
      %v864 = vmul.f32 %v862, 0.125
      %v865 = vmul.f32 %v863, %v863
      %v866 = vsub.f32 %v864, %v865
      %v867 = vsub.f32 %v847, %v863
      %v868 = vadd.f32 %v866, 1e-05
      %v869 = vrsqrt.pop %v868
      %v870 = vmul.f32 %v869, %v848
      %v871 = vlaneseq
      %v872 = vshrl.u32 %v871, 7
      %v873 = vsub.s32 0, %v872
      %v874 = vrot.slane %v870, %v873
      %v875 = vmul.f32 %v867, %v874
      %v876 = vlaneseq
      %v877 = vshrl.u32 %v876, 7
      %v878 = vsub.s32 0, %v877
      %v879 = vrot.slane %v849, %v878
      %v880 = vadd.f32 %v875, %v879
      %v881 = vadd.f32 %v880, %v95
      %v882 = vld [vmem:[%s7 + $0x4] sm:$0x1]
      %v883 = vmul.f32 %v846, %v846
      %v884 = vmul.f32 %v881, %v881
      %v885 = vadd.f32 %v883, %v884
      %v886 = vadd.f32 %v885, 1e-09
      %v887 = vrsqrt.pop %v886
      %v888 = vlaneseq
      %v889 = vshrl.u32 %v888, 7
      %v890 = vsub.s32 0, %v889
      %v891 = vrot.slane %v882, %v890
      %v892 = vmul.f32 %v891, %v887
      %v893 = vadd.f32 %v892, 1.0
      %v894 = vmax.f32 %v893, 0.0
      %v895 = vmul.f32 %v894, %v846
      %v896 = vmul.f32 %v894, %v881
      %897 = vst [vmem:[#allocation12] sm:$0xff] %v895
      %898 = vst [vmem:[#allocation13] sm:$0xff] %v896
    $region57: #{_residual_block_call.1} parent=1 // pred_fallthru
      _
    // Predicated region
    $region58: #{_residual_block_call.1} parent=1 // pred_check
      _
    $region59: #{_residual_block_call.1} parent=1 // pred_check_branch
      %900 = sbr.rel (0) target = $region61
    $region60: #{_residual_block_call.1} parent=1 // pred_region
      %s902 = ssub.s32 128, 128
      %903 = vsyncadd [#allocation6], %s902
      %s905 = sshll.u32 [#allocation12], 4
      %s906 = int_to_ptr.vmem [resolvable:$true] %s905
      %908 = dma.vmem_to_hbm [thread:$0]  %s906, 128, %s8, [#allocation6]
    $region61: #{_residual_block_call.1} parent=1 // pred_fallthru
      _
    // Predicated region
    $region62: #{_residual_block_call.1} parent=1 // pred_check
      _
    $region63: #{_residual_block_call.1} parent=1 // pred_check_branch
      %910 = sbr.rel (0) target = $region65
    $region64: #{_residual_block_call.1} parent=1 // pred_region
      %s912 = ssub.s32 128, 128
      %913 = vsyncadd [#allocation14], %s912
      %s915 = sshll.u32 [#allocation13], 4
      %s916 = int_to_ptr.vmem [resolvable:$true] %s915
      %918 = dma.vmem_to_hbm [thread:$0]  %s916, 128, %s9, [#allocation14]
    $region65: #{_residual_block_call.1} parent=1 // pred_fallthru
      _
    // Predicated region
    $region66: #{_residual_block_call.1} parent=1 // pred_check
      _
    $region67: #{_residual_block_call.1} parent=1 // pred_check_branch
      %920 = sbr.rel (0) target = $region69
    $region68: #{_residual_block_call.1} parent=1 // pred_region
      %921 = dma.done [#allocation6], 128
    $region69: #{_residual_block_call.1} parent=1 // pred_fallthru
      _
    // Predicated region
    $region70: #{_residual_block_call.1} parent=1 // pred_check
      _
    $region71: #{_residual_block_call.1} parent=1 // pred_check_branch
      %923 = sbr.rel (0) target = $region73
    $region72: #{_residual_block_call.1} parent=1 // pred_region
      %924 = dma.done [#allocation14], 128
    $region73: #{_residual_block_call.1} parent=1 // pred_fallthru
      _
    %925 = vsyncpa [#allocation5], 1
    %926 = vsyncpa [#allocation8], 1
    %927 = vsyncpa [#allocation11], 1
    %928 = vsyncpa [#allocation6], 1
    %929 = vsyncpa [#allocation14], 1

</llo_original>
